<compile_context>
chip_gen: v7x
topology: tpu7x:2x2x1
jax: 0.10.0
libtpu: 0.0.40
codegen_flags: <defaults>
</compile_context>

<pallas_src>
import functools

import jax
import jax.numpy as jnp
from jax.experimental import pallas as pl
from jax.experimental.pallas import tpu as pltpu


def _round_up(n, m):
    return ((n + m - 1) // m) * m


def _hash_u32(x):
    """Murmur-style 32-bit integer finalizer (stateless, portable)."""
    x = x ^ (x >> 16)
    x = x * jnp.uint32(0x7FEB352D)
    x = x ^ (x >> 15)
    x = x * jnp.uint32(0x846CA68B)
    x = x ^ (x >> 16)
    return x


def _fused_linear_dropout_kernel(seed_ref, x_ref, w_ref, b_ref, o_ref, *,
                                 training, p):
    """One grid step == one lateral level: y = dropout(x @ W + b).

    x_ref: (1, B_pad, Din_pad)   w_ref: (1, Din_pad, Dout_pad)
    b_ref: (1, 1, Dout_pad)      o_ref: (1, B_pad, Dout_pad)
    seed_ref: (L,) int32 in SMEM (scalar-prefetched, one seed per level).
    """
    lvl = pl.program_id(0)
    x = x_ref[0]                       # (B_pad, Din_pad)
    w = w_ref[0]                       # (Din_pad, Dout_pad)
    b = b_ref[0]                       # (1, Dout_pad)

    # MXU matmul with f32 accumulation; padded rows/cols are zero so they
    # contribute nothing to the valid region.
    y = jnp.dot(x, w, preferred_element_type=jnp.float32) + b

    if training and p > 0.0:
        # Counter-based hash RNG: deterministic per (level-seed, element index),
        # independent across levels because each level gets its own seed.
        # TODO(synk): switch to pltpu.prng_seed/prng_random_bits when the run
        # environment supports TPU PRNG lowering (interpret mode does not).
        seed = seed_ref[lvl].astype(jnp.uint32)
        rows_dim, cols_dim = y.shape
        rows = jax.lax.broadcasted_iota(jnp.int32, y.shape, 0).astype(jnp.uint32)
        cols = jax.lax.broadcasted_iota(jnp.int32, y.shape, 1).astype(jnp.uint32)
        idx = rows * jnp.uint32(cols_dim) + cols
        bits = _hash_u32(idx ^ (seed * jnp.uint32(0x9E3779B9) + jnp.uint32(0x85EBCA6B)))
        # keep-prob and scale both derive from p (threshold compare, not bit test).
        threshold = jnp.uint32(int((1.0 - p) * 4294967296.0))
        keep = bits < threshold
        scale = jnp.float32(1.0 / (1.0 - p))
        y = jnp.where(keep, y * scale, jnp.zeros_like(y))

    o_ref[0] = y.astype(o_ref.dtype)


def _fused_adapter_call(x_stack, w_stack, b_stack, seeds, *, training, p):
    """Single pallas_call over all lateral levels of one column."""
    L, B_pad, Din_pad = x_stack.shape
    Dout_pad = w_stack.shape[2]
    kernel = functools.partial(_fused_linear_dropout_kernel,
                               training=training, p=p)
    return pl.pallas_call(
        kernel,
        out_shape=jax.ShapeDtypeStruct((L, B_pad, Dout_pad), jnp.float32),
        grid_spec=pltpu.PrefetchScalarGridSpec(
            num_scalar_prefetch=1,           # seeds -> SMEM, passed to kernel
            grid=(L,),
            in_specs=[
                pl.BlockSpec((1, B_pad, Din_pad), lambda l, seeds: (l, 0, 0)),
                pl.BlockSpec((1, Din_pad, Dout_pad), lambda l, seeds: (l, 0, 0)),
                pl.BlockSpec((1, 1, Dout_pad), lambda l, seeds: (l, 0, 0)),
            ],
            out_specs=pl.BlockSpec((1, B_pad, Dout_pad),
                                   lambda l, seeds: (l, 0, 0)),
        ),
        compiler_params=pltpu.CompilerParams(
            dimension_semantics=("parallel",)),  # megacore on v7x
    )(seeds, x_stack, w_stack, b_stack)


# ----------------------------------------------------------------------------
# Adapter "module": deterministic parameter construction + forward.
# ----------------------------------------------------------------------------
def make_adapter_params(key, prev_columns_sizes, target_column_sizes):
    """Mirrors _create_lateral_connections: per prev column,
    zip(curr_sizes[:-1], target_sizes[1:]) -> Linear(c_in, t_out)."""
    params = []
    for col_sizes in prev_columns_sizes:
        col_params = []
        for c_in, t_out in zip(col_sizes[:-1], target_column_sizes[1:]):
            key, kw, kb = jax.random.split(key, 3)
            bound = 1.0 / jnp.sqrt(c_in)
            w = jax.random.uniform(kw, (c_in, t_out), jnp.float32, -bound, bound)
            b = jax.random.uniform(kb, (1, t_out), jnp.float32, -bound, bound)
            col_params.append((w, b))
        params.append(col_params)
    return params


def adapter_forward(params, col_activation, col_idx, *, training, p=0.5,
                    base_seed=0, step=0):
    """Pallas equivalent of Adapter.forward(col_activation, col_idx).

    Returns a list of dropped-out lateral activations, one per lateral level.
    All levels are executed in a single fused pallas_call.
    """
    assert 0.0 <= p < 1.0
    column_laterals = params[col_idx]
    L = len(column_laterals)
    B = col_activation[0].shape[0]
    dins = [w.shape[0] for (w, _) in column_laterals]
    douts = [w.shape[1] for (w, _) in column_laterals]

    # Padded slab sizes: sublane-aligned batch, lane-dense (multiple of 128)
    # feature axes so stores are unmasked.
    B_pad = _round_up(max(B, 8), 8)
    Din_pad = _round_up(max(dins), 128)
    Dout_pad = _round_up(max(douts), 128)

    # Zero-pad & stack (weights could be pre-padded once at init in production).
    x_stack = jnp.stack([
        jnp.pad(col_activation[i].astype(jnp.float32),
                ((0, B_pad - col_activation[i].shape[0]),
                 (0, Din_pad - dins[i])))
        for i in range(L)])
    w_stack = jnp.stack([
        jnp.pad(w, ((0, Din_pad - w.shape[0]), (0, Dout_pad - w.shape[1])))
        for (w, _) in column_laterals])
    b_stack = jnp.stack([
        jnp.pad(b, ((0, 0), (0, Dout_pad - b.shape[1])))
        for (_, b) in column_laterals])

    # Per-level seeds; fold in step so masks vary across training steps.
    seeds = jnp.asarray(
        [base_seed + 1_000_003 * step + 1000 * col_idx + i for i in range(L)],
        jnp.int32)

    out = _fused_adapter_call(x_stack, w_stack, b_stack, seeds,
                              training=training, p=p)
    # Slice back to the true (B, Dout_l) shapes per level.
    return [out[i, :B, :douts[i]] for i in range(L)]

    # TODO(synk): non_linear_forward / scale paths (only built when
    # linear=False) are not implemented; the default linear adapter forward is.


if __name__ == "__main__":
    key = jax.random.PRNGKey(0)

    # Small synthetic "columns": 2 previous columns, 3 levels each.
    B = 8
    prev_columns_sizes = [[32, 48, 64], [16, 32, 48]]   # per-level feature dims
    target_column_sizes = [40, 56, 72]                  # target per-level dims

    key, pkey = jax.random.split(key)
    params = make_adapter_params(pkey, prev_columns_sizes, target_column_sizes)

    # Activations of previous column 0 at the lateral levels (levels 0..n-2).
    col_idx = 0
    acts = []
    for lvl, c_in in enumerate(prev_columns_sizes[col_idx][:-1]):
        key, ak = jax.random.split(key)
        acts.append(jax.random.normal(ak, (B, c_in), jnp.float32))

    # Eval-mode run (dropout = identity): exact check against pure-JAX ref.
    outs_eval = adapter_forward(params, acts, col_idx, training=False)
    outs_eval = [jax.block_until_ready(o) for o in outs_eval]
    for lvl, o in enumerate(outs_eval):
        w, b = params[col_idx][lvl]
        ref = acts[lvl] @ w + b
        assert o.shape == (B, target_column_sizes[lvl + 1])
        assert jnp.allclose(o, ref, atol=1e-5, rtol=1e-5)

    # Training-mode run (fused in-kernel dropout, inverted scaling by 2x).
    outs_train = adapter_forward(params, acts, col_idx, training=True,
                                 base_seed=123, step=1)
    outs_train = [jax.block_until_ready(o) for o in outs_train]
    total_kept = 0
    total_elems = 0
    for lvl, o in enumerate(outs_train):
        w, b = params[col_idx][lvl]
        ref = acts[lvl] @ w + b
        assert o.shape == (B, target_column_sizes[lvl + 1])
        # Each element is either dropped (0) or kept and scaled by 1/(1-p)=2.
        ok = jnp.isclose(o, 0.0, atol=1e-6) | jnp.isclose(
            o, 2.0 * ref, atol=1e-4, rtol=1e-4)
        assert bool(jnp.all(ok))
        kept = ~jnp.isclose(o, 0.0, atol=1e-6)
        total_kept += int(jnp.sum(kept))
        total_elems += o.size
    # Loose sanity check that the keep rate is roughly p=0.5.
    keep_frac = total_kept / total_elems
    assert 0.3 < keep_frac < 0.7, keep_frac

    print("KERNEL_OK")
</pallas_src>

<mosaic_0001>
module attributes {stable_mosaic.version = 11 : i64} {
  func.func @_fused_linear_dropout_kernel(%arg0: i32, %arg1: memref<2xi32, #tpu.memory_space<smem>>, %arg2: memref<1x8x128xf32, #tpu.memory_space<vmem>>, %arg3: memref<1x128x128xf32, #tpu.memory_space<vmem>>, %arg4: memref<1x1x128xf32, #tpu.memory_space<vmem>>, %arg5: memref<1x8x128xf32, #tpu.memory_space<vmem>>) attributes {dimension_semantics = [#tpu.dimension_semantics<parallel>], iteration_bounds = array<i64: 2>, scalar_prefetch = 1 : i64, scratch_operands = 0 : i64, tpu.core_type = #tpu.core_type<tc>, window_params = [{transform_indices = @transform_0, window_bounds = array<i64: 1, 8, 128>}, {transform_indices = @transform_1, window_bounds = array<i64: 1, 128, 128>}, {transform_indices = @transform_2, window_bounds = array<i64: 1, 1, 128>}, {transform_indices = @transform_3, window_bounds = array<i64: 1, 8, 128>}]} {
    %c0 = arith.constant 0 : index
    %c0_0 = arith.constant 0 : index
    %c0_1 = arith.constant 0 : index
    %0 = vector.load %arg2[%c0, %c0_0, %c0_1] : memref<1x8x128xf32, #tpu.memory_space<vmem>>, vector<1x8x128xf32>
    %1 = vector.shape_cast %0 : vector<1x8x128xf32> to vector<8x128xf32>
    %c0_2 = arith.constant 0 : index
    %c0_3 = arith.constant 0 : index
    %c0_4 = arith.constant 0 : index
    %2 = vector.load %arg3[%c0_2, %c0_3, %c0_4] : memref<1x128x128xf32, #tpu.memory_space<vmem>>, vector<1x128x128xf32>
    %3 = vector.shape_cast %2 : vector<1x128x128xf32> to vector<128x128xf32>
    %c0_5 = arith.constant 0 : index
    %c0_6 = arith.constant 0 : index
    %c0_7 = arith.constant 0 : index
    %4 = vector.load %arg4[%c0_5, %c0_6, %c0_7] : memref<1x1x128xf32, #tpu.memory_space<vmem>>, vector<1x1x128xf32>
    %5 = vector.shape_cast %4 : vector<1x1x128xf32> to vector<1x128xf32>
    %cst = arith.constant dense<0.000000e+00> : vector<8x128xf32>
    %6 = tpu.matmul %1, %3, %cst {dimension_numbers = #tpu.dot_dimension_numbers<[1], [0], [0], [1], [0, 0, 1, 1], [], []>} : vector<8x128xf32>, vector<128x128xf32>, vector<8x128xf32> -> vector<8x128xf32>
    %7 = vector.broadcast %5 : vector<1x128xf32> to vector<8x128xf32>
    %8 = arith.addf %6, %7 : vector<8x128xf32>
    %c0_8 = arith.constant 0 : index
    %c0_9 = arith.constant 0 : index
    %c0_10 = arith.constant 0 : index
    %9 = vector.load %arg5[%c0_8, %c0_9, %c0_10] : memref<1x8x128xf32, #tpu.memory_space<vmem>>, vector<1x8x128xf32>
    %10 = vector.shape_cast %9 : vector<1x8x128xf32> to vector<8x128xf32>
    %11 = vector.shape_cast %8 : vector<8x128xf32> to vector<1x8x128xf32>
    tpu.vector_store %arg5[%c0_8, %c0_9, %c0_10], %11 {strides = array<i32>} : memref<1x8x128xf32, #tpu.memory_space<vmem>>, vector<1x8x128xf32>,
    return
  }
  func.func @transform_0(%arg0: i32, %arg1: memref<2xi32, #tpu.memory_space<smem>>) -> (i32, i32, i32) {
    %c0_i32 = arith.constant 0 : i32
    %c0_i32_0 = arith.constant 0 : i32
    %c0_i32_1 = arith.constant 0 : i32
    return %arg0, %c0_i32, %c0_i32_0 : i32, i32, i32
  }
  func.func @transform_1(%arg0: i32, %arg1: memref<2xi32, #tpu.memory_space<smem>>) -> (i32, i32, i32) {
    %c0_i32 = arith.constant 0 : i32
    %c0_i32_0 = arith.constant 0 : i32
    %c0_i32_1 = arith.constant 0 : i32
    return %arg0, %c0_i32, %c0_i32_0 : i32, i32, i32
  }
  func.func @transform_2(%arg0: i32, %arg1: memref<2xi32, #tpu.memory_space<smem>>) -> (i32, i32, i32) {
    %c0_i32 = arith.constant 0 : i32
    %c0_i32_0 = arith.constant 0 : i32
    %c0_i32_1 = arith.constant 0 : i32
    return %arg0, %c0_i32, %c0_i32_0 : i32, i32, i32
  }
  func.func @transform_3(%arg0: i32, %arg1: memref<2xi32, #tpu.memory_space<smem>>) -> (i32, i32, i32) {
    %c0_i32 = arith.constant 0 : i32
    %c0_i32_0 = arith.constant 0 : i32
    %c0_i32_1 = arith.constant 0 : i32
    return %arg0, %c0_i32, %c0_i32_0 : i32, i32, i32
  }
}

</mosaic_0001>

<llo_original>
// kernel: tpu_custom_call.1
$region0: #{tpu_custom_call.1}
  #allocation0 [shape = 'u32[]', space=smem, size = 0x4, offset = 0x4, fixed_abs, tag = 'smem constant byte address 0x4 - core index']
  #allocation1 [shape = 'u32[144,128]{1,0:T(1,128)}', space=vmem, size = 0x12000, scoped, tag = 'internal scratch']
  #allocation2 [shape = 's32[1]{0}', space=sflag, size = 0x4, scoped, tag = 'scoped memory for tpu_custom_call.1']
  #allocation3 [shape = 'u8[512]{0}', space=smem, size = 0x200, scoped, tag = 'prefetched SMEM operand 0']
  %s0 = inlined_call_operand.hbm [shape: s32[2], index: 0, kind: input, shape index: {}]
  %s1 = inlined_call_operand.hbm [shape: f32[2,8,128], index: 1, kind: input, shape index: {}]
  %s2 = inlined_call_operand.hbm [shape: f32[2,128,128], index: 2, kind: input, shape index: {}]
  %s3 = inlined_call_operand.vmem [shape: f32[2,1,128], index: 3, kind: input, shape index: {}]
  %s4 = inlined_call_operand.hbm [shape: f32[2,8,128], index: 4, kind: output, shape index: {}]
  %s5 = sld [smem:[#allocation0]]
  $region53: #{tpu_custom_call.1} parent=0
    _
  %s7 = ssub.s32 1, %s5
  %s8 = scalar_select 0, %s7, %s5
  %10 = dma.hbm_to_smem %s0, 16, [#allocation3], [#allocation2]
  %11 = dma.done [#allocation2], 16
  %12 = sfence
  $region1: #{tpu_custom_call.1} parent=0
    #allocation4 [shape = 'u8[8192]{0}', space=vmem, size = 0x2000, scoped, tag = 'input window, operand 1']
    #allocation5 [shape = 's32[2]{0}', space=sflag, size = 0x8, scoped, tag = 'scoped memory for tpu_custom_call.1']
    #allocation6 [shape = 's32[2]{0}', space=sflag, size = 0x8, scoped, tag = 'scoped memory for tpu_custom_call.1']
    #allocation7 [shape = 'u8[131072]{0}', space=vmem, size = 0x20000, scoped, tag = 'input window, operand 2']
    #allocation8 [shape = 's32[2]{0}', space=sflag, size = 0x8, scoped, tag = 'scoped memory for tpu_custom_call.1']
    #allocation9 [shape = 'u8[8192]{0}', space=vmem, size = 0x2000, scoped, tag = 'output window, operand 0']
    %13 = vsyncpa [#allocation5], 0
    %s14 = scalar_lea.sflag [#allocation5], 1
    %15 = vsyncpa %s14, 0
    %16 = vsyncpa [#allocation8], 0
    %s17 = scalar_lea.sflag [#allocation8], 1
    %18 = vsyncpa %s17, 0
    %19 = vsyncpa [#allocation6], 0
    %s20 = scalar_lea.sflag [#allocation6], 1
    %21 = vsyncpa %s20, 0
    loop: start=0, step=1, limit=4
    $region2: #{tpu_custom_call.1} parent=1 // loop_pre_header
      _
    $region3: #{tpu_custom_call.1} parent=1 // loop_header
      %s23 = sphi 0, %s27
      %p24 = scmp.ge.s32.totalorder %s23, 4
      %s33 = sphi 0, %s35
      %s36 = sphi 0, %s33
      %s37 = sphi 0, %s36
      %s53 = sphi 0, %s37
      %s59 = sphi 0, %s61
      %s62 = sphi 0, %s59
      %s63 = sphi 0, %s62
      %s79 = sphi 0, %s63
      %s85 = sphi 0, %s87
      %s88 = sphi 0, %s85
      %s89 = sphi 0, %s88
      %s105 = sphi 0, %s89
      %s111 = sphi 0, %s113
      %s114 = sphi 0, %s111
      %s115 = sphi 0, %s114
      %s131 = sphi 0, %s115
    $region4: #{tpu_custom_call.1} parent=1 // loop_header_branch
      %26 = sbr.rel (%p24) target = $region8
    $region5: #{tpu_custom_call.1} parent=1 // loop_body
      %s28 = ssub.s32 %s23, 1
      %s29 = ssub.s32 %s23, 2
      %s30 = sadd.s32 %s23, 1
      %s31 = ssub.s32 %s23, %s30
      %p32 = scmp.eq.s32.totalorder %s31, 0
      %s34 = sadd.s32 %s33, 1
      %s35 = scalar_select %p32, %s33, %s34
      %p38 = pneg %p32
      %p39 = scmp.eq.s32.totalorder %s23, 1
      %p40 = por %p38, %p39
      %p41 = scmp.ne.s32.totalorder %s33, %s36
      %p42 = scmp.eq.s32.totalorder %s23, 0
      %p43 = por %p41, %p42
      %p44 = scmp.ne.s32.totalorder %s33, %s36
      %p45 = scmp.eq.s32.totalorder %s28, 1
      %p46 = por %p44, %p45
      %p47 = scmp.ne.s32.totalorder %s36, %s37
      %p48 = scmp.eq.s32.totalorder %s28, 0
      %p49 = por %p47, %p48
      %p50 = scmp.ne.s32.totalorder %s36, %s37
      %p51 = scmp.eq.s32.totalorder %s29, 1
      %p52 = por %p50, %p51
      %p54 = scmp.ne.s32.totalorder %s37, %s53
      %p55 = scmp.eq.s32.totalorder %s29, 0
      %p56 = por %p54, %p55
      %s57 = ssub.s32 %s23, %s30
      %p58 = scmp.eq.s32.totalorder %s57, 0
      %s60 = sadd.s32 %s59, 1
      %s61 = scalar_select %p58, %s59, %s60
      %p64 = pneg %p58
      %p65 = scmp.eq.s32.totalorder %s23, 1
      %p66 = por %p64, %p65
      %p67 = scmp.ne.s32.totalorder %s59, %s62
      %p68 = scmp.eq.s32.totalorder %s23, 0
      %p69 = por %p67, %p68
      %p70 = scmp.ne.s32.totalorder %s59, %s62
      %p71 = scmp.eq.s32.totalorder %s28, 1
      %p72 = por %p70, %p71
      %p73 = scmp.ne.s32.totalorder %s62, %s63
      %p74 = scmp.eq.s32.totalorder %s28, 0
      %p75 = por %p73, %p74
      %p76 = scmp.ne.s32.totalorder %s62, %s63
      %p77 = scmp.eq.s32.totalorder %s29, 1
      %p78 = por %p76, %p77
      %p80 = scmp.ne.s32.totalorder %s63, %s79
      %p81 = scmp.eq.s32.totalorder %s29, 0
      %p82 = por %p80, %p81
      %s83 = ssub.s32 %s23, %s30
      %p84 = scmp.eq.s32.totalorder %s83, 0
      %s86 = sadd.s32 %s85, 1
      %s87 = scalar_select %p84, %s85, %s86
      %p90 = pneg %p84
      %p91 = scmp.eq.s32.totalorder %s23, 1
      %p92 = por %p90, %p91
      %p93 = scmp.ne.s32.totalorder %s85, %s88
      %p94 = scmp.eq.s32.totalorder %s23, 0
      %p95 = por %p93, %p94
      %p96 = scmp.ne.s32.totalorder %s85, %s88
      %p97 = scmp.eq.s32.totalorder %s28, 1
      %p98 = por %p96, %p97
      %p99 = scmp.ne.s32.totalorder %s88, %s89
      %p100 = scmp.eq.s32.totalorder %s28, 0
      %p101 = por %p99, %p100
      %p102 = scmp.ne.s32.totalorder %s88, %s89
      %p103 = scmp.eq.s32.totalorder %s29, 1
      %p104 = por %p102, %p103
      %p106 = scmp.ne.s32.totalorder %s89, %s105
      %p107 = scmp.eq.s32.totalorder %s29, 0
      %p108 = por %p106, %p107
      %s109 = ssub.s32 %s23, %s30
      %p110 = scmp.eq.s32.totalorder %s109, 0
      %s112 = sadd.s32 %s111, 1
      %s113 = scalar_select %p110, %s111, %s112
      %p116 = pneg %p110
      %p117 = scmp.eq.s32.totalorder %s23, 1
      %p118 = por %p116, %p117
      %p119 = scmp.ne.s32.totalorder %s111, %s114
      %p120 = scmp.eq.s32.totalorder %s23, 0
      %p121 = por %p119, %p120
      %p122 = scmp.ne.s32.totalorder %s111, %s114
      %p123 = scmp.eq.s32.totalorder %s28, 1
      %p124 = por %p122, %p123
      %p125 = scmp.ne.s32.totalorder %s114, %s115
      %p126 = scmp.eq.s32.totalorder %s28, 0
      %p127 = por %p125, %p126
      %p128 = scmp.ne.s32.totalorder %s114, %s115
      %p129 = scmp.eq.s32.totalorder %s29, 1
      %p130 = por %p128, %p129
      %p132 = scmp.ne.s32.totalorder %s115, %s131
      %p133 = scmp.eq.s32.totalorder %s29, 0
      %p134 = por %p132, %p133
      %p135 = scmp.le.s32.totalorder 1, %s23
      %p136 = scmp.lt.s32.totalorder %s23, 3
      %p137 = pnand %p135, %p136
      %p138 = pneg %p137
      // Predicated region
      $region9: #{tpu_custom_call.1} parent=5 // pred_check
        _
      $region10: #{tpu_custom_call.1} parent=5 // pred_check_branch
        %140 = sbr.rel (%p137) target = $region12
      $region11: #{tpu_custom_call.1} parent=5 // pred_region
        %s141 = ssub.s32 %s23, 1
      $region12: #{tpu_custom_call.1} parent=5 // pred_fallthru
        _
      %p142 = scmp.lt.s32.totalorder %s23, 2
      // Predicated region
      $region13: #{tpu_custom_call.1} parent=5 // pred_check
        %p143 = pneg %p142
      $region14: #{tpu_custom_call.1} parent=5 // pred_check_branch
        %145 = sbr.rel (%p143) target = $region16
      $region15: #{tpu_custom_call.1} parent=5 // pred_region
        // Predicated region
        $region17: #{tpu_custom_call.1} parent=15 // pred_check
          %p146 = pneg %p43
        $region18: #{tpu_custom_call.1} parent=15 // pred_check_branch
          %148 = sbr.rel (%p146) target = $region20
        $region19: #{tpu_custom_call.1} parent=15 // pred_region
          %s149 = sand.u32 %s33, 1
          %s150 = scalar_lea.sflag [#allocation5], %s149
          %s151 = sand.u32 %s33, 1
          %s152 = smul.addr %s151, 8
          %s153 = scalar_lea.vmem [#allocation4], %s152
          %s155 = ssub.s32 128, 128
          %156 = vsyncadd %s150, %s155
          %s157 = smul.addr %s23, 128
          %s158 = scalar_lea.hbm %s1, %s157
          %s160 = sshll.u32 %s153, 4
          %s161 = int_to_ptr.vmem [resolvable:$true] %s160
          %163 = dma.hbm_to_vmem [thread:$0]  %s158, 128, %s161, %s150
        $region20: #{tpu_custom_call.1} parent=15 // pred_fallthru
          _
        // Predicated region
        $region21: #{tpu_custom_call.1} parent=15 // pred_check
          %p164 = pneg %p69
        $region22: #{tpu_custom_call.1} parent=15 // pred_check_branch
          %166 = sbr.rel (%p164) target = $region24
        $region23: #{tpu_custom_call.1} parent=15 // pred_region
          %s167 = sand.u32 %s59, 1
          %s168 = scalar_lea.sflag [#allocation8], %s167
          %s169 = sand.u32 %s59, 1
          %s170 = smul.addr %s169, 128
          %s171 = scalar_lea.vmem [#allocation7], %s170
          %s173 = ssub.s32 2048, 2048
          %174 = vsyncadd %s168, %s173
          %s175 = smul.addr %s23, 16
          %s176 = smul.addr %s175, 128
          %s177 = scalar_lea.hbm %s2, %s176
          %s178 = sshll.u32 %s171, 4
          %s179 = int_to_ptr.vmem [resolvable:$true] %s178
          %184 = dma.hbm_to_vmem [thread:$0]  %s177, 2048, %s179, %s168, 128, 128, 8
        $region24: #{tpu_custom_call.1} parent=15 // pred_fallthru
          _
        // Predicated region
        $region25: #{tpu_custom_call.1} parent=15 // pred_check
          %p185 = pneg %p95
        $region26: #{tpu_custom_call.1} parent=15 // pred_check_branch
          %187 = sbr.rel (%p185) target = $region28
        $region27: #{tpu_custom_call.1} parent=15 // pred_region
          %p188 = scmp.lt.s32.totalorder %s23, 1
          %s189 = scalar_select %p188, %s23, 1
          %s190 = scalar_lea.vmem %s3, %s189
        $region28: #{tpu_custom_call.1} parent=15 // pred_fallthru
          _
      $region16: #{tpu_custom_call.1} parent=5 // pred_fallthru
        _
      %p191 = scmp.le.s32.totalorder 1, %s23
      %p192 = scmp.lt.s32.totalorder %s23, 3
      %p193 = pnand %p191, %p192
      %p194 = pneg %p193
      // Predicated region
      $region29: #{tpu_custom_call.1} parent=5 // pred_check
        _
      $region30: #{tpu_custom_call.1} parent=5 // pred_check_branch
        %196 = sbr.rel (%p193) target = $region32
      $region31: #{tpu_custom_call.1} parent=5 // pred_region
        %s197 = ssub.s32 %s23, 1
        %s198 = sand.u32 %s36, 1
        %s199 = scalar_lea.sflag [#allocation5], %s198
        %s200 = sand.u32 %s36, 1
        %s201 = smul.addr %s200, 8
        %s202 = scalar_lea.vmem [#allocation4], %s201
        // Predicated region
        $region33: #{tpu_custom_call.1} parent=31 // pred_check
          %p203 = pneg %p49
        $region34: #{tpu_custom_call.1} parent=31 // pred_check_branch
          %205 = sbr.rel (%p203) target = $region36
        $region35: #{tpu_custom_call.1} parent=31 // pred_region
          %206 = dma.done %s199, 128
        $region36: #{tpu_custom_call.1} parent=31 // pred_fallthru
          _
        %s207 = sand.u32 %s62, 1
        %s208 = scalar_lea.sflag [#allocation8], %s207
        %s209 = sand.u32 %s62, 1
        %s210 = smul.addr %s209, 128
        %s211 = scalar_lea.vmem [#allocation7], %s210
        // Predicated region
        $region37: #{tpu_custom_call.1} parent=31 // pred_check
          %p212 = pneg %p75
        $region38: #{tpu_custom_call.1} parent=31 // pred_check_branch
          %214 = sbr.rel (%p212) target = $region40
        $region39: #{tpu_custom_call.1} parent=31 // pred_region
          %215 = dma.done %s208, 2048
        $region40: #{tpu_custom_call.1} parent=31 // pred_fallthru
          _
        %s216 = sand.u32 %s36, 1
        %s217 = scalar_lea.sflag [#allocation5], %s216
        %s218 = sand.u32 %s36, 1
        %s219 = smul.addr %s218, 8
        %s220 = scalar_lea.vmem [#allocation4], %s219
        %p221 = pneg %p49
        %p222 = pneg %p46
        %s223 = sand.u32 %s62, 1
        %s224 = scalar_lea.sflag [#allocation8], %s223
        %s225 = sand.u32 %s62, 1
        %s226 = smul.addr %s225, 128
        %s227 = scalar_lea.vmem [#allocation7], %s226
        %p228 = pneg %p75
        %p229 = pneg %p72
        %p230 = scmp.lt.s32.totalorder %s28, 1
        %s231 = scalar_select %p230, %s28, 1
        %s232 = scalar_lea.vmem %s3, %s231
        %p233 = pneg %p101
        %p234 = pneg %p98
        %p235 = pneg %p127
        %p236 = pneg %p124
        %s237 = sand.u32 %s114, 1
        %s238 = scalar_lea.sflag [#allocation6], %s237
        %s239 = sand.u32 %s114, 1
        %s240 = smul.addr %s239, 8
        %s241 = scalar_lea.vmem [#allocation9], %s240
        %p242 = scmp.lt.s32.totalorder %s28, 1
        %s243 = scalar_select %p242, %s28, 1
        %s244 = scalar_lea.vmem %s3, %s243
        %v245 = vld [vmem:[%s202] sm:$0xff]
        %v246 = vld [vmem:[%s211] sm:$0xff]
        %v247 = vld [vmem:[%s211 + $0x8] sm:$0xff]
        %v248 = vld [vmem:[%s211 + $0x10] sm:$0xff]
        %v249 = vld [vmem:[%s211 + $0x18] sm:$0xff]
        %v250 = vld [vmem:[%s211 + $0x20] sm:$0xff]
        %v251 = vld [vmem:[%s211 + $0x28] sm:$0xff]
        %v252 = vld [vmem:[%s211 + $0x30] sm:$0xff]
        %v253 = vld [vmem:[%s211 + $0x38] sm:$0xff]
        %v254 = vld [vmem:[%s211 + $0x40] sm:$0xff]
        %v255 = vld [vmem:[%s211 + $0x48] sm:$0xff]
        %v256 = vld [vmem:[%s211 + $0x50] sm:$0xff]
        %v257 = vld [vmem:[%s211 + $0x58] sm:$0xff]
        %v258 = vld [vmem:[%s211 + $0x60] sm:$0xff]
        %v259 = vld [vmem:[%s211 + $0x68] sm:$0xff]
        %v260 = vld [vmem:[%s211 + $0x70] sm:$0xff]
        %v261 = vld [vmem:[%s211 + $0x78] sm:$0xff]
        %v262 = vld [vmem:[%s244] sm:$0x1]
        %v264 = vlaneseq
        %v265 = vshrl.u32 %v264, 7
        %v266 = vsub.s32 0, %v265
        %v267 = vrot.slane %v262, %v266
        %269 = vmatprep.subr.mxu0 0.0
        %270 = vmatpush1.msra.mxu0 %v246
        %271 = vmatprep.subr.mxu0 0.0
        %272 = vmatpush1.msra.mxu0 %v247
        %273 = vmatprep.subr.mxu0 0.0
        %274 = vmatpush1.msra.mxu0 %v248
        %275 = vmatprep.subr.mxu0 0.0
        %276 = vmatpush1.msra.mxu0 %v249
        %277 = vmatprep.subr.mxu0 0.0
        %278 = vmatpush1.msra.mxu0 %v250
        %279 = vmatprep.subr.mxu0 0.0
        %280 = vmatpush1.msra.mxu0 %v251
        %281 = vmatprep.subr.mxu0 0.0
        %282 = vmatpush1.msra.mxu0 %v252
        %283 = vmatprep.subr.mxu0 0.0
        %284 = vmatpush1.msra.mxu0 %v253
        %285 = vmatprep.subr.mxu0 0.0
        %286 = vmatpush1.msra.mxu0 %v254
        %287 = vmatprep.subr.mxu0 0.0
        %288 = vmatpush1.msra.mxu0 %v255
        %289 = vmatprep.subr.mxu0 0.0
        %290 = vmatpush1.msra.mxu0 %v256
        %291 = vmatprep.subr.mxu0 0.0
        %292 = vmatpush1.msra.mxu0 %v257
        %293 = vmatprep.subr.mxu0 0.0
        %294 = vmatpush1.msra.mxu0 %v258
        %295 = vmatprep.subr.mxu0 0.0
        %296 = vmatpush1.msra.mxu0 %v259
        %297 = vmatprep.subr.mxu0 0.0
        %298 = vmatpush1.msra.mxu0 %v260
        %299 = vmatprep.subr.mxu0 0.0
        %300 = vmatpush1.msra.mxu0 %v261
        %301 = vmatprep.subr.mxu0 0.0
        %302 = vmatpush1.msra.mxu0 0.0
        %303 = vmatprep.subr.mxu0 0.0
        %304 = vmatpush1.msra.mxu0 0.0
        %305 = vmatprep.subr.mxu0 0.0
        %306 = vmatpush1.msra.mxu0 0.0
        %307 = vmatprep.subr.mxu0 0.0
        %308 = vmatpush1.msra.mxu0 0.0
        %309 = vmatprep.subr.mxu0 0.0
        %310 = vmatpush1.msra.mxu0 0.0
        %311 = vmatprep.subr.mxu0 0.0
        %312 = vmatpush1.msra.mxu0 0.0
        %313 = vmatprep.subr.mxu0 0.0
        %314 = vmatpush1.msra.mxu0 0.0
        %315 = vmatprep.subr.mxu0 0.0
        %316 = vmatpush1.msra.mxu0 0.0
        %317 = vmatprep.subr.mxu0 0.0
        %318 = vmatpush1.msra.mxu0 0.0
        %319 = vmatprep.subr.mxu0 0.0
        %320 = vmatpush1.msra.mxu0 0.0
        %321 = vmatprep.subr.mxu0 0.0
        %322 = vmatpush1.msra.mxu0 0.0
        %323 = vmatprep.subr.mxu0 0.0
        %324 = vmatpush1.msra.mxu0 0.0
        %325 = vmatprep.subr.mxu0 0.0
        %326 = vmatpush1.msra.mxu0 0.0
        %327 = vmatprep.subr.mxu0 0.0
        %328 = vmatpush1.msra.mxu0 0.0
        %329 = vmatprep.subr.mxu0 0.0
        %330 = vmatpush1.msra.mxu0 0.0
        %331 = vmatprep.subr.mxu0 0.0
        %332 = vmatpush1.msra.mxu0 0.0
        %333 = vmatprep.mubr.f32.mxu0 0.0
        %334 = vmatmul.mubr.f32.gmra.mrb[0].mxu0 %v245
        %v335 = vpop.f32.mrb[0].mxu0
        %v336 = vadd.f32 %v267, %v335
        %v337 = vpop.f32.mrb[0].mxu0
        %338 = vdwg.mxu0
        %339 = vst [vmem:[%s241] sm:$0xff] %v336
        %s340 = sand.u32 %s114, 1
        %s341 = scalar_lea.sflag [#allocation6], %s340
        %s342 = sand.u32 %s114, 1
        %s343 = smul.addr %s342, 8
        %s344 = scalar_lea.vmem [#allocation9], %s343
        // Predicated region
        $region41: #{tpu_custom_call.1} parent=31 // pred_check
          %p345 = pneg %p124
        $region42: #{tpu_custom_call.1} parent=31 // pred_check_branch
          %347 = sbr.rel (%p345) target = $region44
        $region43: #{tpu_custom_call.1} parent=31 // pred_region
          %s349 = ssub.s32 128, 128
          %350 = vsyncadd %s341, %s349
          %s351 = smul.addr %s28, 128
          %s352 = scalar_lea.hbm %s4, %s351
          %s354 = sshll.u32 %s344, 4
          %s355 = int_to_ptr.vmem [resolvable:$true] %s354
          %357 = dma.vmem_to_hbm [thread:$0]  %s355, 128, %s352, %s341
        $region44: #{tpu_custom_call.1} parent=31 // pred_fallthru
          _
      $region32: #{tpu_custom_call.1} parent=5 // pred_fallthru
        _
      %p358 = scmp.le.s32.totalorder 2, %s23
      // Predicated region
      $region45: #{tpu_custom_call.1} parent=5 // pred_check
        %p359 = pneg %p358
      $region46: #{tpu_custom_call.1} parent=5 // pred_check_branch
        %361 = sbr.rel (%p359) target = $region48
      $region47: #{tpu_custom_call.1} parent=5 // pred_region
        %s362 = ssub.s32 %s23, 2
        // Predicated region
        $region49: #{tpu_custom_call.1} parent=47 // pred_check
          %p363 = pneg %p130
        $region50: #{tpu_custom_call.1} parent=47 // pred_check_branch
          %365 = sbr.rel (%p363) target = $region52
        $region51: #{tpu_custom_call.1} parent=47 // pred_region
          %s366 = sand.u32 %s115, 1
          %s367 = scalar_lea.sflag [#allocation6], %s366
          %s368 = sand.u32 %s115, 1
          %s369 = smul.addr %s368, 8
          %s370 = scalar_lea.vmem [#allocation9], %s369
          %371 = dma.done %s367, 128
        $region52: #{tpu_custom_call.1} parent=47 // pred_fallthru
          _
      $region48: #{tpu_custom_call.1} parent=5 // pred_fallthru
        _
    $region6: #{tpu_custom_call.1} parent=1 // loop_footer
      %s27 = sadd.s32 1, %s23
    $region7: #{tpu_custom_call.1} parent=1 // loop_footer_branch
      %22 = sbr.rel target = $region3
    $region8: #{tpu_custom_call.1} parent=1 // loop_exit
      _
    %372 = vsyncpa [#allocation5], 1
    %s373 = scalar_lea.sflag [#allocation5], 1
    %374 = vsyncpa %s373, 1
    %375 = vsyncpa [#allocation8], 1
    %s376 = scalar_lea.sflag [#allocation8], 1
    %377 = vsyncpa %s376, 1
    %378 = vsyncpa [#allocation6], 1
    %s379 = scalar_lea.sflag [#allocation6], 1
    %380 = vsyncpa %s379, 1

</llo_original>
